<compile_context>
chip_gen: v5e
topology: v5e:2x2
jax: 0.10.0
libtpu: 0.0.40
codegen_flags: <defaults>
</compile_context>

<pallas_src>
import jax
import jax.numpy as jnp
from jax.experimental import pallas as pl
from jax.experimental.pallas import tpu as pltpu


def _normalize_kernel(x_ref, o_ref):
    # Fused cast + divide: compute in f32 on the VPU/EUP, store in out dtype.
    # Division (not *1/255) keeps bit-parity with x/255.0; EUP slot is free
    # in a memory-bound kernel.
    o_ref[...] = (x_ref[...].astype(jnp.float32) / jnp.float32(255.0)).astype(o_ref.dtype)


def _round_up(v: int, m: int) -> int:
    return ((v + m - 1) // m) * m


def _choose_lane_width(size: int) -> int:
    """Largest lane-dense width (multiple of 128) that divides `size`, else 0."""
    for lane in (1024, 512, 256, 128):
        if size % lane == 0:
            return lane
    return 0


def _vmem_capacity_bytes() -> int:
    """Per-TensorCore VMEM capacity; conservative default if query fails."""
    try:
        info = pltpu.get_tpu_info()
        cap = int(getattr(info, "vmem_capacity_bytes", 0) or 0)
        if cap > 0:
            return cap
    except Exception:
        pass
    return 64 << 20  # v7x per-TC capacity: safe lower bound across generations


def _normalize_2d(x2: jax.Array, out_dtype, *, rows: int, lane: int) -> jax.Array:
    in_itemsize = jnp.dtype(x2.dtype).itemsize
    out_itemsize = jnp.dtype(out_dtype).itemsize

    # ---- per-generation VMEM budget & block sizing --------------------------
    vmem_cap = _vmem_capacity_bytes()                  # 128 MiB v5e/v6e, 64 MiB v7x
    vmem_limit = min(3 * vmem_cap // 4, 96 << 20)      # 96 MiB v5e/v6e, 48 MiB v7x
    # Double-buffered footprint ~= 2*(in_block + out_block); keep 20% headroom.
    budget = int(0.8 * vmem_limit)
    elems_per_block = max(budget // (2 * (in_itemsize + out_itemsize)), lane)
    # Cap output blocks around 8 MiB: diminishing returns beyond that.
    elems_per_block = min(elems_per_block, (8 << 20) // out_itemsize)

    ideal_rows = max(elems_per_block // lane, 1)
    if ideal_rows >= rows:
        num_steps = 1
    else:
        num_steps = pl.cdiv(rows, ideal_rows)
    # v7x megacore: guarantee >=2 (even) grid steps when there is enough work,
    # so both TensorCores get a roughly balanced share.
    if rows >= 64:
        if num_steps < 2:
            num_steps = 2
        elif num_steps % 2:
            num_steps += 1
    tile_rows = pl.cdiv(rows, num_steps)
    if tile_rows < rows:
        # Multiple of 32 keeps the block legal for packed sub-32-bit inputs.
        tile_rows = min(_round_up(tile_rows, 32), rows)
    grid = (pl.cdiv(rows, tile_rows),)

    size = rows * lane
    cost = pl.CostEstimate(
        flops=size,
        transcendentals=0,
        bytes_accessed=size * (in_itemsize + out_itemsize),
    )

    return pl.pallas_call(
        _normalize_kernel,
        out_shape=jax.ShapeDtypeStruct((rows, lane), out_dtype),
        grid_spec=pltpu.PrefetchScalarGridSpec(
            num_scalar_prefetch=0,
            grid=grid,
            in_specs=[pl.BlockSpec((tile_rows, lane), lambda i: (i, 0))],
            out_specs=pl.BlockSpec((tile_rows, lane), lambda i: (i, 0)),
        ),
        compiler_params=pltpu.CompilerParams(
            dimension_semantics=("parallel",),
            vmem_limit_bytes=vmem_limit,
        ),
        cost_estimate=cost,
    )(x2)


def normalize(x: jax.Array) -> jax.Array:
    """x / 255.0, matching torch.div(x, 255.0) semantics (float output)."""
    orig_shape = x.shape
    in_dtype = x.dtype

    # torch.div promotes integer/bool inputs to float; floats keep their dtype.
    if jnp.issubdtype(in_dtype, jnp.floating):
        out_dtype = in_dtype
    else:
        out_dtype = jnp.float32
        if in_dtype == jnp.bool_:
            # bool refs don't always lower cleanly in VMEM; cast in the wrapper.
            x = x.astype(jnp.uint8)

    size = x.size
    if size == 0:
        return jnp.zeros(orig_shape, dtype=out_dtype)

    # ---- lane-dense path: element count divisible by 128 --------------------
    lane = _choose_lane_width(size)
    if lane:
        rows = size // lane
        out = _normalize_2d(x.reshape(rows, lane), out_dtype, rows=rows, lane=lane)
        return out.reshape(orig_shape)

    # ---- fallback: count not a multiple of 128 -------------------------------
    # Run the lane-dense prefix through the kernel (unmasked stores); the
    # <128-element tail is handled by plain XLA.  This avoids masked vst.msk
    # stores on every row that a narrow trailing dim (e.g. C=3) would cause.
    xf = x.reshape(-1)
    n_main = (size // 128) * 128
    if n_main == 0:
        return (xf.astype(jnp.float32) / 255.0).astype(out_dtype).reshape(orig_shape)
    lane = _choose_lane_width(n_main)   # always >= 128 here
    rows = n_main // lane
    main = _normalize_2d(xf[:n_main].reshape(rows, lane), out_dtype, rows=rows, lane=lane)
    rem = (xf[n_main:].astype(jnp.float32) / 255.0).astype(out_dtype)
    return jnp.concatenate([main.reshape(-1), rem]).reshape(orig_shape)


if __name__ == "__main__":
    key = jax.random.PRNGKey(0)
    k_f32, k_u8 = jax.random.split(key)

    # Float input (NCHW image-like), values in [0, 255).
    x = jax.random.uniform(k_f32, (2, 4, 16, 16), dtype=jnp.float32) * 255.0
    y = normalize(x)
    jax.block_until_ready(y)
    ref = x / 255.0
    assert y.shape == x.shape and y.dtype == x.dtype
    assert jnp.allclose(y, ref, atol=1e-6, rtol=1e-6)

    # Integer (uint8 pixel) input: cast is fused inside the kernel, output f32.
    x_u8 = jax.random.randint(k_u8, (2, 4, 64, 64), 0, 256, dtype=jnp.int32).astype(jnp.uint8)
    y_u8 = normalize(x_u8)
    jax.block_until_ready(y_u8)
    ref_u8 = x_u8.astype(jnp.float32) / 255.0
    assert y_u8.shape == x_u8.shape and y_u8.dtype == jnp.float32
    assert jnp.allclose(y_u8, ref_u8, atol=1e-6, rtol=1e-6)

    print("KERNEL_OK")
</pallas_src>

<mosaic_0001>
module attributes {stable_mosaic.version = 11 : i64} {
  func.func @_normalize_kernel(%arg0: i32, %arg1: memref<2x1024xf32, #tpu.memory_space<vmem>>, %arg2: memref<2x1024xf32, #tpu.memory_space<vmem>>) attributes {dimension_semantics = [#tpu.dimension_semantics<parallel>], iteration_bounds = array<i64: 1>, scalar_prefetch = 0 : i64, scratch_operands = 0 : i64, tpu.core_type = #tpu.core_type<tc>, window_params = [{transform_indices = @transform_0, window_bounds = array<i64: 2, 1024>}, {transform_indices = @transform_1, window_bounds = array<i64: 2, 1024>}]} {
    %c0 = arith.constant 0 : index
    %c0_0 = arith.constant 0 : index
    %0 = vector.load %arg1[%c0, %c0_0] : memref<2x1024xf32, #tpu.memory_space<vmem>>, vector<2x1024xf32>
    %cst = arith.constant 2.550000e+02 : f32
    %1 = vector.broadcast %cst : f32 to vector<2x1024xf32>
    %2 = arith.divf %0, %1 : vector<2x1024xf32>
    %c0_1 = arith.constant 0 : index
    %c0_2 = arith.constant 0 : index
    %3 = vector.load %arg2[%c0_1, %c0_2] : memref<2x1024xf32, #tpu.memory_space<vmem>>, vector<2x1024xf32>
    tpu.vector_store %arg2[%c0_1, %c0_2], %2 {strides = array<i32>} : memref<2x1024xf32, #tpu.memory_space<vmem>>, vector<2x1024xf32>,
    return
  }
  func.func @transform_0(%arg0: i32) -> (i32, i32) {
    %c0_i32 = arith.constant 0 : i32
    %c0_i32_0 = arith.constant 0 : i32
    return %arg0, %c0_i32 : i32, i32
  }
  func.func @transform_1(%arg0: i32) -> (i32, i32) {
    %c0_i32 = arith.constant 0 : i32
    %c0_i32_0 = arith.constant 0 : i32
    return %arg0, %c0_i32 : i32, i32
  }
}

</mosaic_0001>

<llo_original>
// kernel: tpu_custom_call.1
$region0: #{tpu_custom_call.1}
  #allocation0 [shape = 'u32[]', space=smem, size = 0x4, offset = 0x4, fixed_abs, tag = 'smem constant byte address 0x4 - core index']
  #allocation1 [shape = 'u32[72,128]{1,0:T(1,128)}', space=vmem, size = 0x9000, scoped, tag = 'internal scratch']
  %s0 = inlined_call_operand.hbm [shape: f32[2,1024], index: 0, kind: input, shape index: {}]
  %s1 = inlined_call_operand.hbm [shape: f32[2,1024], index: 1, kind: output, shape index: {}]
  %s2 = sld [smem:[#allocation0]]
  $region18: #{tpu_custom_call.1} parent=0
    _
  %s4 = ssub.s32 1, %s2
  %s5 = scalar_select 0, %s4, %s2
  $region1: #{tpu_custom_call.1} parent=0
    #allocation2 [shape = 'u8[8192]{0}', space=vmem, size = 0x2000, scoped, tag = 'input window, operand 0, single buffered']
    #allocation3 [shape = 's32[1]{0}', space=sflag, size = 0x4, scoped, tag = 'scoped memory for tpu_custom_call.1']
    #allocation4 [shape = 's32[1]{0}', space=sflag, size = 0x4, scoped, tag = 'scoped memory for tpu_custom_call.1']
    #allocation5 [shape = 'u8[8192]{0}', space=vmem, size = 0x2000, scoped, tag = 'output window, operand 0, single buffered']
    %6 = vsyncpa [#allocation3], 0
    %7 = vsyncpa [#allocation4], 0
    // Predicated region
    $region2: #{tpu_custom_call.1} parent=1 // pred_check
      _
    $region3: #{tpu_custom_call.1} parent=1 // pred_check_branch
      %9 = sbr.rel (0) target = $region5
    $region4: #{tpu_custom_call.1} parent=1 // pred_region
      %11 = vsyncadd [#allocation3], 0
      %s13 = sshll.u32 %s0, 4
      %s14 = int_to_ptr.hbm [resolvable:$true] %s13
      %s15 = sshll.u32 [#allocation2], 4
      %s16 = int_to_ptr.vmem [resolvable:$true] %s15
      %18 = dma.hbm_to_vmem [thread:$0]  %s14, 256, %s16, [#allocation3]
    $region5: #{tpu_custom_call.1} parent=1 // pred_fallthru
      _
    // Predicated region
    $region6: #{tpu_custom_call.1} parent=1 // pred_check
      _
    $region7: #{tpu_custom_call.1} parent=1 // pred_check_branch
      %20 = sbr.rel (0) target = $region9
    $region8: #{tpu_custom_call.1} parent=1 // pred_region
      %22 = dma.done [#allocation3], 256
    $region9: #{tpu_custom_call.1} parent=1 // pred_fallthru
      _
    %v23 = vld [vmem:[#allocation2] sm:$0xff]
    %v24 = vld [vmem:[#allocation2 + $0x8] sm:$0xff]
    %v25 = vrcp.pop 255.0
    %v26 = vmul.f32 255.0, %v25
    %v27 = vsub.f32 1.0, %v26
    %v28 = vmul.f32 %v25, %v27
    %v29 = vadd.f32 %v25, %v28
    %vm30 = vweird.f32 %v25
    %v31 = vsel %vm30, %v25, %v29
    %v32 = vmul.f32 %v23, %v31
    %v33 = vmul.f32 %v24, %v31
    %34 = vst [vmem:[#allocation5] sm:$0xff] %v32
    %35 = vst [vmem:[#allocation5 + $0x8] sm:$0xff] %v33
    // Predicated region
    $region10: #{tpu_custom_call.1} parent=1 // pred_check
      _
    $region11: #{tpu_custom_call.1} parent=1 // pred_check_branch
      %37 = sbr.rel (0) target = $region13
    $region12: #{tpu_custom_call.1} parent=1 // pred_region
      %39 = vsyncadd [#allocation4], 0
      %s41 = sshll.u32 [#allocation5], 4
      %s42 = int_to_ptr.vmem [resolvable:$true] %s41
      %s43 = sshll.u32 %s1, 4
      %s44 = int_to_ptr.hbm [resolvable:$true] %s43
      %46 = dma.vmem_to_hbm [thread:$0]  %s42, 256, %s44, [#allocation4]
    $region13: #{tpu_custom_call.1} parent=1 // pred_fallthru
      _
    // Predicated region
    $region14: #{tpu_custom_call.1} parent=1 // pred_check
      _
    $region15: #{tpu_custom_call.1} parent=1 // pred_check_branch
      %48 = sbr.rel (0) target = $region17
    $region16: #{tpu_custom_call.1} parent=1 // pred_region
      %50 = dma.done [#allocation4], 256
    $region17: #{tpu_custom_call.1} parent=1 // pred_fallthru
      _
    %51 = vsyncpa [#allocation3], 1
    %52 = vsyncpa [#allocation4], 1

</llo_original>
